<compile_context>
chip_gen: v5e
topology: v5e:2x2
jax: 0.10.0
libtpu: 0.0.40
codegen_flags: <defaults>
</compile_context>

<pallas_src>
import functools

import jax
import jax.numpy as jnp
from jax.experimental import pallas as pl
from jax.experimental.pallas import tpu as pltpu


def _round_up(v, m):
    return ((v + m - 1) // m) * m


def _param_offsets(n_features, hidden_size):
    """Row offsets of w1 / w2 / w3 / biases inside the packed parameter array.
    Offsets are 16-aligned (bf16 sublane tile) for clean in-kernel slicing."""
    o1 = 0
    o2 = o1 + _round_up(n_features, 16)
    o3 = o2 + _round_up(hidden_size, 16)
    ob = o3 + _round_up(hidden_size, 16)
    rows = _round_up(ob + 3, 16)
    return o1, o2, o3, ob, rows


def _actor_kernel(x_ref, p_ref, out_ref, *, n_features, hidden, n_actions,
                  o1, o2, o3, ob):
    x = x_ref[...]                                        # (TB, n_features) bf16

    w1 = p_ref[o1:o1 + n_features, :hidden]               # (n_features, hidden) bf16
    w2 = p_ref[o2:o2 + hidden, :hidden]                   # (hidden, hidden)     bf16
    w3 = p_ref[o3:o3 + hidden, :n_actions]                # (hidden, n_actions)  bf16
    b1 = p_ref[ob:ob + 1, :hidden].astype(jnp.float32)    # (1, hidden)
    b2 = p_ref[ob + 1:ob + 2, :hidden].astype(jnp.float32)
    b3 = p_ref[ob + 2:ob + 3, :n_actions].astype(jnp.float32)

    # fc1 + ReLU  (bf16 operands, f32 accumulation on the MXU)
    h1 = jnp.dot(x, w1, preferred_element_type=jnp.float32)
    h1 = jnp.maximum(h1 + b1, 0.0)

    # fc2 + ReLU
    h2 = jnp.dot(h1.astype(jnp.bfloat16), w2, preferred_element_type=jnp.float32)
    h2 = jnp.maximum(h2 + b2, 0.0)

    # fc3 logits
    logits = jnp.dot(h2.astype(jnp.bfloat16), w3,
                     preferred_element_type=jnp.float32) + b3

    # numerically-stable softmax over the action axis (dim=1), exact divide
    m = jnp.max(logits, axis=-1, keepdims=True)
    e = jnp.exp(logits - m)
    denom = jnp.sum(e, axis=-1, keepdims=True)
    out_ref[...] = (e / denom).astype(out_ref.dtype)


@functools.partial(jax.jit, static_argnames=("n_actions", "n_features", "hidden_size"))
def actor_net_forward(x, packed, *, n_actions, n_features, hidden_size=40):
    """x: (B, n_features) float32. packed: bf16 packed params from init_params."""
    B = x.shape[0]
    o1, o2, o3, ob, rows = _param_offsets(n_features, hidden_size)
    width = max(hidden_size, n_actions)
    assert packed.shape == (rows, width)

    x_bf16 = x.astype(jnp.bfloat16)

    # Batch tiling: a single block for tiny batches; otherwise >= 2 grid steps so
    # both v7x TensorCores get work, with TB capped at 1024 rows (the out block is
    # lane-padded to 128 wide in VMEM).
    if B <= 8:
        TB = B
    else:
        TB = min(1024, _round_up(pl.cdiv(B, 2), 8))
    grid = (pl.cdiv(B, TB),)

    # VMEM budget: double-buffered x / out blocks (lane-padded), resident params,
    # and f32 intermediates. Cap at 64 MiB so it is also safe on v7x.
    lane_pad = lambda v: _round_up(v, 128)
    per_step = (2 * TB * lane_pad(n_features) * 2          # x (bf16), double-buffered
                + 2 * TB * lane_pad(n_actions) * 4         # out (f32), double-buffered
                + rows * lane_pad(width) * 2               # resident packed params
                + 3 * TB * lane_pad(width) * 4)            # h1 / h2 / logits (f32)
    vmem_limit = int(max(32 << 20, min(64 << 20, 2 * per_step)))

    flops = 2 * B * (n_features * hidden_size
                     + hidden_size * hidden_size
                     + hidden_size * n_actions)
    transcendentals = B * n_actions                        # exp per logit
    bytes_accessed = (2 * B * n_features                   # x (bf16)
                      + 2 * rows * width                   # packed params (bf16)
                      + 4 * B * n_actions)                 # probs (f32)

    kernel = functools.partial(_actor_kernel,
                               n_features=n_features, hidden=hidden_size,
                               n_actions=n_actions, o1=o1, o2=o2, o3=o3, ob=ob)

    return pl.pallas_call(
        kernel,
        out_shape=jax.ShapeDtypeStruct((B, n_actions), jnp.float32),
        grid=grid,
        in_specs=[
            pl.BlockSpec((TB, n_features), lambda i: (i, 0)),   # x (batch-tiled)
            pl.BlockSpec((rows, width), lambda i: (0, 0)),      # packed params (resident)
        ],
        out_specs=pl.BlockSpec((TB, n_actions), lambda i: (i, 0)),
        compiler_params=pltpu.CompilerParams(
            dimension_semantics=("parallel",),
            vmem_limit_bytes=vmem_limit),
        cost_estimate=pl.CostEstimate(
            flops=flops,
            transcendentals=transcendentals,
            bytes_accessed=bytes_accessed),
    )(x_bf16, packed)


def init_params(key, n_actions, n_features, hidden_size=40):
    """nn.Linear-style U(-1/sqrt(fan_in), 1/sqrt(fan_in)) init, stored directly in
    kernel layout: pre-transposed weights + biases packed into ONE bf16 array."""
    ks = jax.random.split(key, 6)

    def linear(kw, kb, fan_in, fan_out):
        bound = 1.0 / (float(fan_in) ** 0.5)
        w = jax.random.uniform(kw, (fan_in, fan_out), jnp.float32, -bound, bound)
        b = jax.random.uniform(kb, (fan_out,), jnp.float32, -bound, bound)
        return w, b

    w1, b1 = linear(ks[0], ks[1], n_features, hidden_size)
    w2, b2 = linear(ks[2], ks[3], hidden_size, hidden_size)
    w3, b3 = linear(ks[4], ks[5], hidden_size, n_actions)

    o1, o2, o3, ob, rows = _param_offsets(n_features, hidden_size)
    width = max(hidden_size, n_actions)

    packed = jnp.zeros((rows, width), jnp.float32)
    packed = packed.at[o1:o1 + n_features, :hidden_size].set(w1)
    packed = packed.at[o2:o2 + hidden_size, :hidden_size].set(w2)
    packed = packed.at[o3:o3 + hidden_size, :n_actions].set(w3)
    packed = packed.at[ob, :hidden_size].set(b1)
    packed = packed.at[ob + 1, :hidden_size].set(b2)
    packed = packed.at[ob + 2, :n_actions].set(b3)
    return packed.astype(jnp.bfloat16)


if __name__ == "__main__":
    key = jax.random.PRNGKey(0)
    k_param, k_x = jax.random.split(key)

    n_actions, n_features, hidden_size = 6, 32, 40
    batch = 8

    packed = init_params(k_param, n_actions, n_features, hidden_size)
    x = jax.random.normal(k_x, (batch, n_features), jnp.float32)

    probs = actor_net_forward(x, packed, n_actions=n_actions,
                              n_features=n_features, hidden_size=hidden_size)
    probs = jax.block_until_ready(probs)

    # Pure-JAX reference following the same bf16-operand / f32-accumulate arithmetic.
    o1, o2, o3, ob, _ = _param_offsets(n_features, hidden_size)
    w1 = packed[o1:o1 + n_features, :hidden_size]
    w2 = packed[o2:o2 + hidden_size, :hidden_size]
    w3 = packed[o3:o3 + hidden_size, :n_actions]
    b1 = packed[ob, :hidden_size].astype(jnp.float32)
    b2 = packed[ob + 1, :hidden_size].astype(jnp.float32)
    b3 = packed[ob + 2, :n_actions].astype(jnp.float32)

    xb = x.astype(jnp.bfloat16)
    h1 = jnp.maximum(jnp.dot(xb, w1, preferred_element_type=jnp.float32) + b1, 0.0)
    h2 = jnp.maximum(jnp.dot(h1.astype(jnp.bfloat16), w2,
                             preferred_element_type=jnp.float32) + b2, 0.0)
    logits = jnp.dot(h2.astype(jnp.bfloat16), w3,
                     preferred_element_type=jnp.float32) + b3
    ref = jax.nn.softmax(logits, axis=1)

    assert probs.shape == (batch, n_actions)
    # Exact divide in the kernel softmax -> rows sum to 1 to f32 rounding.
    assert jnp.allclose(jnp.sum(probs, axis=1), 1.0, atol=1e-4)
    assert jnp.allclose(probs, ref, atol=2e-3)

    print("KERNEL_OK")
</pallas_src>

<mosaic_0001>
module attributes {stable_mosaic.version = 11 : i64} {
  func.func @_actor_kernel(%arg0: i32, %arg1: memref<8x32xbf16, #tpu.memory_space<vmem>>, %arg2: memref<144x40xbf16, #tpu.memory_space<vmem>>, %arg3: memref<8x6xf32, #tpu.memory_space<vmem>>) attributes {dimension_semantics = [#tpu.dimension_semantics<parallel>], iteration_bounds = array<i64: 1>, scalar_prefetch = 0 : i64, scratch_operands = 0 : i64, tpu.core_type = #tpu.core_type<tc>, window_params = [{transform_indices = @transform_0, window_bounds = array<i64: 8, 32>}, {pipeline_mode = #tpu.pipeline_mode<synchronous>, transform_indices = @transform_1, window_bounds = array<i64: 144, 40>}, {transform_indices = @transform_2, window_bounds = array<i64: 8, 6>}]} {
    %c0 = arith.constant 0 : index
    %c0_0 = arith.constant 0 : index
    %0 = vector.load %arg1[%c0, %c0_0] : memref<8x32xbf16, #tpu.memory_space<vmem>>, vector<8x32xbf16>
    %c0_1 = arith.constant 0 : index
    %c0_2 = arith.constant 0 : index
    %1 = vector.load %arg2[%c0_1, %c0_2] : memref<144x40xbf16, #tpu.memory_space<vmem>>, vector<32x40xbf16>
    %c32 = arith.constant 32 : index
    %c0_3 = arith.constant 0 : index
    %2 = vector.load %arg2[%c32, %c0_3] : memref<144x40xbf16, #tpu.memory_space<vmem>>, vector<40x40xbf16>
    %c80 = arith.constant 80 : index
    %c0_4 = arith.constant 0 : index
    %3 = vector.load %arg2[%c80, %c0_4] : memref<144x40xbf16, #tpu.memory_space<vmem>>, vector<40x6xbf16>
    %c128 = arith.constant 128 : index
    %c0_5 = arith.constant 0 : index
    %4 = vector.load %arg2[%c128, %c0_5] : memref<144x40xbf16, #tpu.memory_space<vmem>>, vector<1x40xbf16>
    %5 = arith.extf %4 : vector<1x40xbf16> to vector<1x40xf32>
    %c129 = arith.constant 129 : index
    %c0_6 = arith.constant 0 : index
    %6 = vector.load %arg2[%c129, %c0_6] : memref<144x40xbf16, #tpu.memory_space<vmem>>, vector<1x40xbf16>
    %7 = arith.extf %6 : vector<1x40xbf16> to vector<1x40xf32>
    %c130 = arith.constant 130 : index
    %c0_7 = arith.constant 0 : index
    %8 = vector.load %arg2[%c130, %c0_7] : memref<144x40xbf16, #tpu.memory_space<vmem>>, vector<1x6xbf16>
    %9 = arith.extf %8 : vector<1x6xbf16> to vector<1x6xf32>
    %cst = arith.constant dense<0.000000e+00> : vector<8x40xf32>
    %10 = tpu.matmul %0, %1, %cst {dimension_numbers = #tpu.dot_dimension_numbers<[1], [0], [0], [1], [0, 0, 1, 1], [], []>} : vector<8x32xbf16>, vector<32x40xbf16>, vector<8x40xf32> -> vector<8x40xf32>
    %11 = vector.broadcast %5 : vector<1x40xf32> to vector<8x40xf32>
    %12 = arith.addf %10, %11 : vector<8x40xf32>
    %cst_8 = arith.constant 0.000000e+00 : f32
    %13 = vector.broadcast %cst_8 : f32 to vector<8x40xf32>
    %14 = arith.maximumf %12, %13 : vector<8x40xf32>
    %15 = arith.truncf %14 : vector<8x40xf32> to vector<8x40xbf16>
    %cst_9 = arith.constant dense<0.000000e+00> : vector<8x40xf32>
    %16 = tpu.matmul %15, %2, %cst_9 {dimension_numbers = #tpu.dot_dimension_numbers<[1], [0], [0], [1], [0, 0, 1, 1], [], []>} : vector<8x40xbf16>, vector<40x40xbf16>, vector<8x40xf32> -> vector<8x40xf32>
    %17 = vector.broadcast %7 : vector<1x40xf32> to vector<8x40xf32>
    %18 = arith.addf %16, %17 : vector<8x40xf32>
    %cst_10 = arith.constant 0.000000e+00 : f32
    %19 = vector.broadcast %cst_10 : f32 to vector<8x40xf32>
    %20 = arith.maximumf %18, %19 : vector<8x40xf32>
    %21 = arith.truncf %20 : vector<8x40xf32> to vector<8x40xbf16>
    %cst_11 = arith.constant dense<0.000000e+00> : vector<8x6xf32>
    %22 = tpu.matmul %21, %3, %cst_11 {dimension_numbers = #tpu.dot_dimension_numbers<[1], [0], [0], [1], [0, 0, 1, 1], [], []>} : vector<8x40xbf16>, vector<40x6xbf16>, vector<8x6xf32> -> vector<8x6xf32>
    %23 = vector.broadcast %9 : vector<1x6xf32> to vector<8x6xf32>
    %24 = arith.addf %22, %23 : vector<8x6xf32>
    %cst_12 = arith.constant dense<0xFF800000> : vector<8xf32>
    %25 = vector.multi_reduction <maximumf>, %24, %cst_12 [1] : vector<8x6xf32> to vector<8xf32>
    %26 = vector.shape_cast %25 : vector<8xf32> to vector<8x1xf32>
    %27 = vector.broadcast %26 : vector<8x1xf32> to vector<8x6xf32>
    %28 = arith.subf %24, %27 : vector<8x6xf32>
    %29 = math.exp %28 : vector<8x6xf32>
    %cst_13 = arith.constant dense<0.000000e+00> : vector<8xf32>
    %30 = vector.multi_reduction <add>, %29, %cst_13 [1] : vector<8x6xf32> to vector<8xf32>
    %31 = vector.shape_cast %30 : vector<8xf32> to vector<8x1xf32>
    %32 = vector.broadcast %31 : vector<8x1xf32> to vector<8x6xf32>
    %33 = arith.divf %29, %32 : vector<8x6xf32>
    %c0_14 = arith.constant 0 : index
    %c0_15 = arith.constant 0 : index
    %34 = vector.load %arg3[%c0_14, %c0_15] : memref<8x6xf32, #tpu.memory_space<vmem>>, vector<8x6xf32>
    tpu.vector_store %arg3[%c0_14, %c0_15], %33 {strides = array<i32>} : memref<8x6xf32, #tpu.memory_space<vmem>>, vector<8x6xf32>,
    return
  }
  func.func @transform_0(%arg0: i32) -> (i32, i32) {
    %c0_i32 = arith.constant 0 : i32
    %c0_i32_0 = arith.constant 0 : i32
    return %arg0, %c0_i32 : i32, i32
  }
  func.func @transform_1(%arg0: i32) -> (i32, i32) {
    %c0_i32 = arith.constant 0 : i32
    %c0_i32_0 = arith.constant 0 : i32
    %c0_i32_1 = arith.constant 0 : i32
    return %c0_i32, %c0_i32_0 : i32, i32
  }
  func.func @transform_2(%arg0: i32) -> (i32, i32) {
    %c0_i32 = arith.constant 0 : i32
    %c0_i32_0 = arith.constant 0 : i32
    return %arg0, %c0_i32 : i32, i32
  }
}

</mosaic_0001>

<llo_original>
// kernel: actor_net_forward.1
$region0: #{actor_net_forward.1}
  #allocation0 [shape = 'u32[]', space=smem, size = 0x4, offset = 0x4, fixed_abs, tag = 'smem constant byte address 0x4 - core index']
  #allocation1 [shape = 'u32[72,128]{1,0:T(1,128)}', space=vmem, size = 0x9000, scoped, tag = 'internal scratch']
  %s0 = inlined_call_operand.vmem [shape: bf16[8,32], index: 0, kind: input, shape index: {}]
  %s1 = inlined_call_operand.vmem [shape: bf16[144,40], index: 1, kind: input, shape index: {}]
  %s2 = inlined_call_operand.hbm [shape: f32[8,6], index: 2, kind: output, shape index: {}]
  %s3 = sld [smem:[#allocation0]]
  $region18: #{actor_net_forward.1} parent=0
    _
  %s5 = ssub.s32 1, %s3
  %s6 = scalar_select 0, %s5, %s3
  $region1: #{actor_net_forward.1} parent=0
    #allocation2 [shape = 'u8[4096]{0}', space=vmem, size = 0x1000, scoped, tag = 'output window, operand 0, single buffered']
    #allocation3 [shape = 's32[1]{0}', space=sflag, size = 0x4, scoped, tag = 'scoped memory for actor_net_forward.1']
    %7 = vsyncpa [#allocation3], 0
    // Predicated region
    $region2: #{actor_net_forward.1} parent=1 // pred_check
      _
    $region3: #{actor_net_forward.1} parent=1 // pred_check_branch
      %9 = sbr.rel (0) target = $region5
    $region4: #{actor_net_forward.1} parent=1 // pred_region
      _
    $region5: #{actor_net_forward.1} parent=1 // pred_fallthru
      _
    // Predicated region
    $region6: #{actor_net_forward.1} parent=1 // pred_check
      _
    $region7: #{actor_net_forward.1} parent=1 // pred_check_branch
      %11 = sbr.rel (0) target = $region9
    $region8: #{actor_net_forward.1} parent=1 // pred_region
      _
    $region9: #{actor_net_forward.1} parent=1 // pred_fallthru
      _
    %v13 = vld [vmem:[%s0] sm:$0xf]
    %v14 = vld [vmem:[%s1] sm:$0xf]
    %v15 = vld [vmem:[%s1 + $0x4] sm:$0xf]
    %v16 = vld [vmem:[%s1 + $0x8] sm:$0xf]
    %v17 = vld [vmem:[%s1 + $0xc] sm:$0xf]
    %v18 = vld [vmem:[%s1 + $0x10] sm:$0xf]
    %v19 = vld [vmem:[%s1 + $0x14] sm:$0xf]
    %v20 = vld [vmem:[%s1 + $0x18] sm:$0xf]
    %v21 = vld [vmem:[%s1 + $0x1c] sm:$0xf]
    %v22 = vld [vmem:[%s1 + $0x20] sm:$0xf]
    %v23 = vld [vmem:[%s1 + $0x28] sm:$0xf]
    %v24 = vld [vmem:[%s1 + $0x2c] sm:$0xf]
    %v25 = vld [vmem:[%s1 + $0x30] sm:$0xf]
    %v26 = vld [vmem:[%s1 + $0x34] sm:$0xf]
    %v27 = vld [vmem:[%s1 + $0x38] sm:$0xf]
    %v28 = vld [vmem:[%s1 + $0x40] sm:$0x1]
    %v29 = vunpack.c.l.bf16 %v28
    %v30 = vld [vmem:[%s1 + $0x40] sm:$0x2]
    %v31 = vunpack.c.l.bf16 %v30
    %v32 = vperm.slane %v29, 0
    %v37 = vunpack.c.l.b16 %v14
    %v38 = vunpack.c.l.b16 %v15
    %v39 = vunpack.c.l.b16 %v16
    %v40 = vunpack.c.l.b16 %v17
    %v41 = vpack.c.b16 %v38, %v37
    %v42 = vpack.c.b16 %v40, %v39
    %vm45 = vcmask 261120
    %v47 = vsel %vm45, %v13, 0
    %49 = vmatpush.bf16.msra.mxu0 0
    %50 = vmatpush.bf16.msra.mxu0 0
    %51 = vmatpush.bf16.msra.mxu0 0
    %52 = vmatpush.bf16.msra.mxu0 0
    %53 = vmatpush.bf16.msra.mxu0 0
    %54 = vmatpush.bf16.msra.mxu0 0
    %55 = vmatpush.bf16.msra.mxu0 %v42
    %56 = vmatpush.bf16.msra.mxu0 %v41
    %57 = vmatmul.bf16.gmra.mxu0 %v47
    %v58 = vpop.f32.mrf.mxu0
    %v59 = vadd.f32 %v32, %v58
    %v60 = vpop.f32.mrf.mxu0
    %61 = vdwg.mxu0
    %v62 = vmax.f32 %v59, 0.0
    %v63 = vpack.c.bf16 %v62, %v62
    %v64 = vperm.slane %v29, 1
    %v70 = vunpack.c.l.b16 %v18
    %v71 = vunpack.c.l.b16 %v19
    %v72 = vunpack.c.l.b16 %v20
    %v73 = vunpack.c.l.b16 %v21
    %v74 = vunpack.c.l.b16 %v22
    %v75 = vpack.c.b16 %v71, %v70
    %v76 = vpack.c.b16 %v73, %v72
    %v77 = vpack.c.b16 %v74, %v74
    %vm80 = vcmask 326656
    %v82 = vsel %vm80, %v63, 0
    %vm84 = vcmask 1043456
    %v86 = vsel %vm84, %v77, 0
    %88 = vmatpush.bf16.msra.mxu0 0
    %89 = vmatpush.bf16.msra.mxu0 0
    %90 = vmatpush.bf16.msra.mxu0 0
    %91 = vmatpush.bf16.msra.mxu0 0
    %92 = vmatpush.bf16.msra.mxu0 0
    %93 = vmatpush.bf16.msra.mxu0 %v86
    %94 = vmatpush.bf16.msra.mxu0 %v76
    %95 = vmatpush.bf16.msra.mxu0 %v75
    %96 = vmatmul.bf16.gmra.mxu0 %v82
    %v97 = vpop.f32.mrf.mxu0
    %v98 = vadd.f32 %v64, %v97
    %v99 = vpop.f32.mrf.mxu0
    %100 = vdwg.mxu0
    %v101 = vmax.f32 %v98, 0.0
    %v102 = vpack.c.bf16 %v101, %v101
    %v103 = vperm.slane %v31, 2
    %v109 = vunpack.c.l.b16 %v23
    %v110 = vunpack.c.l.b16 %v24
    %v111 = vunpack.c.l.b16 %v25
    %v112 = vunpack.c.l.b16 %v26
    %v113 = vunpack.c.l.b16 %v27
    %v114 = vpack.c.b16 %v110, %v109
    %v115 = vpack.c.b16 %v112, %v111
    %v116 = vpack.c.b16 %v113, %v113
    %v120 = vsel %vm80, %v102, 0
    %v123 = vsel %vm84, %v116, 0
    %125 = vmatpush.bf16.msra.mxu0 0
    %126 = vmatpush.bf16.msra.mxu0 0
    %127 = vmatpush.bf16.msra.mxu0 0
    %128 = vmatpush.bf16.msra.mxu0 0
    %129 = vmatpush.bf16.msra.mxu0 0
    %130 = vmatpush.bf16.msra.mxu0 %v123
    %131 = vmatpush.bf16.msra.mxu0 %v115
    %132 = vmatpush.bf16.msra.mxu0 %v114
    %133 = vmatmul.bf16.gmra.mxu0 %v120
    %v134 = vpop.f32.mrf.mxu0
    %v135 = vadd.f32 %v103, %v134
    %v136 = vpop.f32.mrf.mxu0
    %137 = vdwg.mxu0
    %vm138 = vcmask 48128
    %v139 = vsel %vm138, %v135, -inf
    %140 = vmax.xlane.f32.xlu0 %v139
    %v141 = vpop.xlane.xlu0 %140
    %v142 = vsub.f32 %v135, %v141
    %v143 = vmul.f32 %v142, 1.442695
    %v144 = vpow.pop %v143
    %v145 = vsel %vm138, %v144, 0.0
    %146 = vadd.xlane.f32.xlu0 %v145
    %v147 = vpop.xlane.xlu0 %146
    %v148 = vrcp.pop %v147
    %v149 = vmul.f32 %v147, %v148
    %v150 = vsub.f32 1.0, %v149
    %v151 = vmul.f32 %v148, %v150
    %v152 = vadd.f32 %v148, %v151
    %vm153 = vweird.f32 %v147
    %vm154 = vweird.f32 %v148
    %vm155 = vmor %vm153, %vm154
    %v156 = vsel %vm155, %v148, %v152
    %v157 = vand.u32 2147483647, %v147
    %vm158 = vcmp.eq.f32.partialorder %v157, 8.507059e+37
    %v159 = vand.u32 %v147, 2147483648
    %v160 = vor.u32 1.1754944e-38, %v159
    %v161 = vsel %vm158, %v160, %v156
    %v162 = vmul.f32 %v144, %v161
    %163 = vst.msk [vmem:[#allocation2] sm:$0xff] %vm138, %v162
    // Predicated region
    $region10: #{actor_net_forward.1} parent=1 // pred_check
      _
    $region11: #{actor_net_forward.1} parent=1 // pred_check_branch
      %165 = sbr.rel (0) target = $region13
    $region12: #{actor_net_forward.1} parent=1 // pred_region
      %167 = vsyncadd [#allocation3], 0
      %s169 = sshll.u32 [#allocation2], 4
      %s170 = int_to_ptr.vmem [resolvable:$true] %s169
      %s171 = sshll.u32 %s2, 4
      %s172 = int_to_ptr.hbm [resolvable:$true] %s171
      %174 = dma.vmem_to_hbm [thread:$0]  %s170, 128, %s172, [#allocation3]
    $region13: #{actor_net_forward.1} parent=1 // pred_fallthru
      _
    // Predicated region
    $region14: #{actor_net_forward.1} parent=1 // pred_check
      _
    $region15: #{actor_net_forward.1} parent=1 // pred_check_branch
      %176 = sbr.rel (0) target = $region17
    $region16: #{actor_net_forward.1} parent=1 // pred_region
      %178 = dma.done [#allocation3], 128
    $region17: #{actor_net_forward.1} parent=1 // pred_fallthru
      _
    %179 = vsyncpa [#allocation3], 1

</llo_original>
